<compile_context>
chip_gen: v7x
topology: tpu7x:2x2x1
jax: 0.10.0
libtpu: 0.0.40
codegen_flags: <defaults>
</compile_context>

<pallas_src>
import functools

import numpy as np
import jax
import jax.numpy as jnp
from jax.experimental import pallas as pl
from jax.experimental.pallas import tpu as pltpu


def _round_up(x, m):
    return ((x + m - 1) // m) * m


@functools.lru_cache(maxsize=None)
def _vmem_budget_bytes():
    """Generation-aware VMEM budget (v7x: 64 MiB/TC, v5e/v6e: 128 MiB)."""
    try:
        cap = int(pltpu.get_tpu_info().vmem_capacity_bytes)
    except Exception:
        cap = 64 * 1024 * 1024          # conservative: v7x per-TC physical
    return int(min(max(32 * 1024 * 1024, cap // 2), 100 * 1024 * 1024))


def _dft2_operator(H, W, nfp):
    """Fused 2-D rfft2 operator, shape (H*W, 2*nfp).

    Columns [0:nfp]      -> real part of bin (kh, kw), flat index kh*Wf + kw
    Columns [nfp:2*nfp]  -> imag part of the same bins
    Columns beyond H*Wf in each half are zero padding (loss-neutral).
    """
    Wf = W // 2 + 1
    h = np.arange(H, dtype=np.float64)
    w = np.arange(W, dtype=np.float64)
    kh = np.arange(H, dtype=np.float64)
    kw = np.arange(Wf, dtype=np.float64)
    ah = np.outer(h, kh) / H                         # (H, H)
    aw = np.outer(w, kw) / W                         # (W, Wf)
    ang = 2.0 * np.pi * (ah[:, None, :, None] + aw[None, :, None, :])
    ang = ang.reshape(H * W, H * Wf)                 # rows p=h*W+w, cols q=kh*Wf+kw
    d = np.zeros((H * W, 2 * nfp), np.float32)
    d[:, :H * Wf] = np.cos(ang)                      # Re:  sum I * cos(theta)
    d[:, nfp:nfp + H * Wf] = -np.sin(ang)            # Im: -sum I * sin(theta)
    return d


def _fft_loss_kernel(x_ref, g_ref, d_ref, amp_ref, pha_ref,
                     acc_amp_ref, acc_pha_ref, *, nfp, eps_dc):
    """One grid step = TB image pairs; accumulates per-bin squared diffs."""
    i = pl.program_id(0)

    @pl.when(i == 0)
    def _init():
        acc_amp_ref[...] = jnp.zeros_like(acc_amp_ref)
        acc_pha_ref[...] = jnp.zeros_like(acc_pha_ref)

    d = d_ref[...]                                            # (K, 2*nfp)

    # ONE fused 2-D DFT matmul per operand: (TB, K) @ (K, 2*nfp), K = H*W.
    ox = jnp.dot(x_ref[...], d, preferred_element_type=jnp.float32)
    og = jnp.dot(g_ref[...], d, preferred_element_type=jnp.float32)

    # x+eps / gt+eps only shifts the DC bin by eps*H*W (real column 0).
    col = jax.lax.broadcasted_iota(jnp.int32, ox.shape, 1)
    dc = jnp.where(col == 0, jnp.float32(eps_dc), jnp.float32(0.0))
    ox = ox + dc
    og = og + dc

    xr, xi = ox[:, :nfp], ox[:, nfp:]
    gr, gi = og[:, :nfp], og[:, nfp:]

    # Amplitude loss: numerically stable (|X| - |G|)^2 form.
    ax = jnp.sqrt(xr * xr + xi * xi)
    ag = jnp.sqrt(gr * gr + gi * gi)
    da = ax - ag
    acc_amp_ref[...] += da * da

    # Phase loss: raw angle difference (NOT wrapped), matching torch.angle.
    dp = jnp.arctan2(xi, xr) - jnp.arctan2(gi, gr)
    acc_pha_ref[...] += dp * dp

    @pl.when(i == pl.num_programs(0) - 1)
    def _finalize():
        amp_ref[0, 0] = jnp.sum(acc_amp_ref[...])
        pha_ref[0, 0] = jnp.sum(acc_pha_ref[...])


def _fft_loss_xla(x, gt):
    # TODO(synk): images whose fused 2-D DFT operator does not fit VMEM need a
    # separable two-stage Pallas DFT; use XLA's rfft2 there (exact semantics).
    x = x + 1e-8
    gt = gt + 1e-8
    xf = jnp.fft.rfft2(x, norm="backward")
    gf = jnp.fft.rfft2(gt, norm="backward")
    amp = jnp.sum((jnp.abs(xf) - jnp.abs(gf)) ** 2)
    pha = jnp.sum((jnp.angle(xf) - jnp.angle(gf)) ** 2)
    return amp, pha


@jax.jit
def fft_loss(x, gt):
    B, C, H, W = x.shape
    K = H * W
    Wf = W // 2 + 1
    nfreq = H * Wf
    nfp = _round_up(nfreq, 128)              # lane-aligned real/imag halves
    d_bytes = K * 2 * nfp * 4

    budget = _vmem_budget_bytes()
    if d_bytes > 12 * 1024 * 1024:           # fused operator too big for VMEM
        return _fft_loss_xla(x, gt)

    n_img = B * C
    # Contiguous reshape + same-dtype cast: no extra HBM pass for f32 inputs.
    xf = x.reshape(n_img, K).astype(jnp.float32)
    gf = gt.reshape(n_img, K).astype(jnp.float32)

    # Per-step VMEM footprint per image row (bytes):
    #   2 inputs x 2 pipeline buffers x K f32, ~8 output-width f32 temps
    #   (ox/og/dc/amp/phase intermediates), 2 per-bin accumulators (nfp wide).
    per_img = (4 * K + 8 * (2 * nfp) + 2 * nfp) * 4
    avail = max(budget - 2 * d_bytes - (4 << 20), per_img * 8)
    tb = max(8, min(int(avail // per_img), _round_up(n_img, 8)))
    tb = (tb // 8) * 8                        # sublane-aligned block rows
    s = -(-n_img // tb)                       # grid steps
    n_pad = s * tb
    if n_pad != n_img:
        # Padded all-zero image pairs contribute exactly 0 to both losses
        # (identical DFTs, identical DC correction).
        xf = jnp.pad(xf, ((0, n_pad - n_img), (0, 0)))
        gf = jnp.pad(gf, ((0, n_pad - n_img), (0, 0)))

    dop = jnp.asarray(_dft2_operator(H, W, nfp))

    kernel = functools.partial(_fft_loss_kernel, nfp=nfp,
                               eps_dc=float(1e-8 * H * W))

    grid_spec = pltpu.PrefetchScalarGridSpec(
        num_scalar_prefetch=0,
        grid=(s,),
        in_specs=[
            pl.BlockSpec((tb, K), lambda i: (i, 0)),
            pl.BlockSpec((tb, K), lambda i: (i, 0)),
            pl.BlockSpec((K, 2 * nfp), lambda i: (0, 0)),
        ],
        out_specs=[
            pl.BlockSpec((1, 1), lambda i: (0, 0),
                         memory_space=pltpu.MemorySpace.SMEM),
            pl.BlockSpec((1, 1), lambda i: (0, 0),
                         memory_space=pltpu.MemorySpace.SMEM),
        ],
        scratch_shapes=[
            pltpu.VMEM((tb, nfp), jnp.float32),   # amp per-bin accumulator
            pltpu.VMEM((tb, nfp), jnp.float32),   # phase per-bin accumulator
        ],
    )

    amp, pha = pl.pallas_call(
        kernel,
        grid_spec=grid_spec,
        out_shape=(jax.ShapeDtypeStruct((1, 1), jnp.float32),
                   jax.ShapeDtypeStruct((1, 1), jnp.float32)),
        compiler_params=pltpu.CompilerParams(
            dimension_semantics=("arbitrary",),
            vmem_limit_bytes=budget),
    )(xf, gf, dop)

    return amp[0, 0], pha[0, 0]


def fft_loss_ref(x, gt):
    # Pure-JAX reference mirroring the PyTorch forward.
    x = x + 1e-8
    gt = gt + 1e-8
    xf = jnp.fft.rfft2(x, norm="backward")
    gf = jnp.fft.rfft2(gt, norm="backward")
    loss_amp = jnp.mean(jnp.sum((jnp.abs(xf) - jnp.abs(gf)) ** 2))
    loss_phase = jnp.mean(jnp.sum((jnp.angle(xf) - jnp.angle(gf)) ** 2))
    return loss_amp, loss_phase


if __name__ == "__main__":
    key = jax.random.PRNGKey(0)
    k1, k2 = jax.random.split(key)
    B, C, H, W = 2, 4, 16, 16
    # +1.0 bias keeps bins away from the atan2 branch cut.
    x = jax.random.normal(k1, (B, C, H, W), dtype=jnp.float32) + 1.0
    gt = jax.random.normal(k2, (B, C, H, W), dtype=jnp.float32) + 1.0

    loss_amp, loss_phase = fft_loss(x, gt)
    jax.block_until_ready((loss_amp, loss_phase))

    ref_amp, ref_phase = fft_loss_ref(x, gt)
    ok = (bool(jnp.isfinite(loss_amp)) and bool(jnp.isfinite(loss_phase))
          and bool(jnp.allclose(loss_amp, ref_amp, rtol=2e-2))
          # phase allowed looser tolerance: +/-pi branch at near-real bins
          and bool(jnp.allclose(loss_phase, ref_phase, rtol=2e-1)))
    if ok:
        print("KERNEL_OK")
</pallas_src>

<mosaic_0001>
module attributes {stable_mosaic.version = 11 : i64} {
  func.func @_fft_loss_kernel(%arg0: i32, %arg1: memref<8x256xf32, #tpu.memory_space<vmem>>, %arg2: memref<8x256xf32, #tpu.memory_space<vmem>>, %arg3: memref<256x512xf32, #tpu.memory_space<vmem>>, %arg4: memref<1x1xf32, #tpu.memory_space<smem>>, %arg5: memref<1x1xf32, #tpu.memory_space<smem>>, %arg6: memref<8x256xf32, #tpu.memory_space<vmem>>, %arg7: memref<8x256xf32, #tpu.memory_space<vmem>>) attributes {dimension_semantics = [#tpu.dimension_semantics<arbitrary>], iteration_bounds = array<i64: 1>, scalar_prefetch = 0 : i64, scratch_operands = 2 : i64, tpu.core_type = #tpu.core_type<tc>, window_params = [{transform_indices = @transform_0, window_bounds = array<i64: 8, 256>}, {transform_indices = @transform_1, window_bounds = array<i64: 8, 256>}, {pipeline_mode = #tpu.pipeline_mode<synchronous>, transform_indices = @transform_2, window_bounds = array<i64: 256, 512>}, {transform_indices = @transform_3, window_bounds = array<i64: 1, 1>}, {transform_indices = @transform_4, window_bounds = array<i64: 1, 1>}]} {
    %c0_i32 = arith.constant 0 : i32
    %0 = arith.cmpi eq, %arg0, %c0_i32 : i32
    %1 = arith.extui %0 : i1 to i32
    %c0_i32_0 = arith.constant 0 : i32
    %2 = arith.cmpi ne, %1, %c0_i32_0 : i32
    scf.if %2 {
      %cst_20 = arith.constant 0.000000e+00 : f32
      %43 = vector.broadcast %cst_20 : f32 to vector<8x256xf32>
      %c0_21 = arith.constant 0 : index
      %c0_22 = arith.constant 0 : index
      %44 = vector.load %arg6[%c0_21, %c0_22] : memref<8x256xf32, #tpu.memory_space<vmem>>, vector<8x256xf32>
      tpu.vector_store %arg6[%c0_21, %c0_22], %43 {strides = array<i32>} : memref<8x256xf32, #tpu.memory_space<vmem>>, vector<8x256xf32>,
      %cst_23 = arith.constant 0.000000e+00 : f32
      %45 = vector.broadcast %cst_23 : f32 to vector<8x256xf32>
      %c0_24 = arith.constant 0 : index
      %c0_25 = arith.constant 0 : index
      %46 = vector.load %arg7[%c0_24, %c0_25] : memref<8x256xf32, #tpu.memory_space<vmem>>, vector<8x256xf32>
      tpu.vector_store %arg7[%c0_24, %c0_25], %45 {strides = array<i32>} : memref<8x256xf32, #tpu.memory_space<vmem>>, vector<8x256xf32>,
    } else {
    }
    %c0 = arith.constant 0 : index
    %c0_1 = arith.constant 0 : index
    %3 = vector.load %arg3[%c0, %c0_1] : memref<256x512xf32, #tpu.memory_space<vmem>>, vector<256x512xf32>
    %c0_2 = arith.constant 0 : index
    %c0_3 = arith.constant 0 : index
    %4 = vector.load %arg1[%c0_2, %c0_3] : memref<8x256xf32, #tpu.memory_space<vmem>>, vector<8x256xf32>
    %cst = arith.constant dense<0.000000e+00> : vector<8x512xf32>
    %5 = tpu.matmul %4, %3, %cst {dimension_numbers = #tpu.dot_dimension_numbers<[1], [0], [0], [1], [0, 0, 1, 1], [], []>} : vector<8x256xf32>, vector<256x512xf32>, vector<8x512xf32> -> vector<8x512xf32>
    %c0_4 = arith.constant 0 : index
    %c0_5 = arith.constant 0 : index
    %6 = vector.load %arg2[%c0_4, %c0_5] : memref<8x256xf32, #tpu.memory_space<vmem>>, vector<8x256xf32>
    %cst_6 = arith.constant dense<0.000000e+00> : vector<8x512xf32>
    %7 = tpu.matmul %6, %3, %cst_6 {dimension_numbers = #tpu.dot_dimension_numbers<[1], [0], [0], [1], [0, 0, 1, 1], [], []>} : vector<8x256xf32>, vector<256x512xf32>, vector<8x512xf32> -> vector<8x512xf32>
    %8 = tpu.iota {dimensions = array<i32: 1>} : vector<8x512xi32>
    %c0_i32_7 = arith.constant 0 : i32
    %9 = vector.broadcast %c0_i32_7 : i32 to vector<8x512xi32>
    %10 = arith.cmpi eq, %8, %9 : vector<8x512xi32>
    %cst_8 = arith.constant 2.560000e-06 : f32
    %cst_9 = arith.constant 0.000000e+00 : f32
    %11 = vector.broadcast %cst_8 : f32 to vector<8x512xf32>
    %12 = vector.broadcast %cst_9 : f32 to vector<8x512xf32>
    %13 = arith.select %10, %11, %12 : vector<8x512xi1>, vector<8x512xf32>
    %14 = arith.addf %5, %13 : vector<8x512xf32>
    %15 = arith.addf %7, %13 : vector<8x512xf32>
    %16 = vector.extract_strided_slice %14 {offsets = [0, 0], sizes = [8, 256], strides = [1, 1]} : vector<8x512xf32> to vector<8x256xf32>
    %17 = vector.extract_strided_slice %14 {offsets = [0, 256], sizes = [8, 256], strides = [1, 1]} : vector<8x512xf32> to vector<8x256xf32>
    %18 = vector.extract_strided_slice %15 {offsets = [0, 0], sizes = [8, 256], strides = [1, 1]} : vector<8x512xf32> to vector<8x256xf32>
    %19 = vector.extract_strided_slice %15 {offsets = [0, 256], sizes = [8, 256], strides = [1, 1]} : vector<8x512xf32> to vector<8x256xf32>
    %20 = arith.mulf %16, %16 : vector<8x256xf32>
    %21 = arith.mulf %17, %17 : vector<8x256xf32>
    %22 = arith.addf %20, %21 : vector<8x256xf32>
    %23 = math.sqrt %22 : vector<8x256xf32>
    %24 = arith.mulf %18, %18 : vector<8x256xf32>
    %25 = arith.mulf %19, %19 : vector<8x256xf32>
    %26 = arith.addf %24, %25 : vector<8x256xf32>
    %27 = math.sqrt %26 : vector<8x256xf32>
    %28 = arith.subf %23, %27 : vector<8x256xf32>
    %c0_10 = arith.constant 0 : index
    %c0_11 = arith.constant 0 : index
    %29 = vector.load %arg6[%c0_10, %c0_11] : memref<8x256xf32, #tpu.memory_space<vmem>>, vector<8x256xf32>
    %30 = arith.mulf %28, %28 : vector<8x256xf32>
    %31 = arith.addf %29, %30 : vector<8x256xf32>
    %c0_12 = arith.constant 0 : index
    %c0_13 = arith.constant 0 : index
    %32 = vector.load %arg6[%c0_12, %c0_13] : memref<8x256xf32, #tpu.memory_space<vmem>>, vector<8x256xf32>
    tpu.vector_store %arg6[%c0_12, %c0_13], %31 {strides = array<i32>} : memref<8x256xf32, #tpu.memory_space<vmem>>, vector<8x256xf32>,
    %33 = math.atan2 %17, %16 : vector<8x256xf32>
    %34 = math.atan2 %19, %18 : vector<8x256xf32>
    %35 = arith.subf %33, %34 : vector<8x256xf32>
    %c0_14 = arith.constant 0 : index
    %c0_15 = arith.constant 0 : index
    %36 = vector.load %arg7[%c0_14, %c0_15] : memref<8x256xf32, #tpu.memory_space<vmem>>, vector<8x256xf32>
    %37 = arith.mulf %35, %35 : vector<8x256xf32>
    %38 = arith.addf %36, %37 : vector<8x256xf32>
    %c0_16 = arith.constant 0 : index
    %c0_17 = arith.constant 0 : index
    %39 = vector.load %arg7[%c0_16, %c0_17] : memref<8x256xf32, #tpu.memory_space<vmem>>, vector<8x256xf32>
    tpu.vector_store %arg7[%c0_16, %c0_17], %38 {strides = array<i32>} : memref<8x256xf32, #tpu.memory_space<vmem>>, vector<8x256xf32>,
    %c0_i32_18 = arith.constant 0 : i32
    %40 = arith.cmpi eq, %arg0, %c0_i32_18 : i32
    %41 = arith.extui %40 : i1 to i32
    %c0_i32_19 = arith.constant 0 : i32
    %42 = arith.cmpi ne, %41, %c0_i32_19 : i32
    scf.if %42 {
      %c0_20 = arith.constant 0 : index
      %c0_21 = arith.constant 0 : index
      %43 = vector.load %arg6[%c0_20, %c0_21] : memref<8x256xf32, #tpu.memory_space<vmem>>, vector<8x256xf32>
      %44 = vector.shape_cast %43 : vector<8x256xf32> to vector<1x8x256xf32>
      %cst_22 = arith.constant dense<0.000000e+00> : vector<1xf32>
      %45 = vector.multi_reduction <add>, %44, %cst_22 [1, 2] : vector<1x8x256xf32> to vector<1xf32>
      %46 = vector.shape_cast %45 : vector<1xf32> to vector<1x1x1xf32>
      %47 = vector.extract %46[0, 0, 0] : f32 from vector<1x1x1xf32>
      %c0_23 = arith.constant 0 : index
      %c0_24 = arith.constant 0 : index
      %48 = memref.load %arg4[%c0_23, %c0_24] : memref<1x1xf32, #tpu.memory_space<smem>>
      memref.store %47, %arg4[%c0_23, %c0_24] : memref<1x1xf32, #tpu.memory_space<smem>>
      %c0_25 = arith.constant 0 : index
      %c0_26 = arith.constant 0 : index
      %49 = vector.load %arg7[%c0_25, %c0_26] : memref<8x256xf32, #tpu.memory_space<vmem>>, vector<8x256xf32>
      %50 = vector.shape_cast %49 : vector<8x256xf32> to vector<1x8x256xf32>
      %cst_27 = arith.constant dense<0.000000e+00> : vector<1xf32>
      %51 = vector.multi_reduction <add>, %50, %cst_27 [1, 2] : vector<1x8x256xf32> to vector<1xf32>
      %52 = vector.shape_cast %51 : vector<1xf32> to vector<1x1x1xf32>
      %53 = vector.extract %52[0, 0, 0] : f32 from vector<1x1x1xf32>
      %c0_28 = arith.constant 0 : index
      %c0_29 = arith.constant 0 : index
      %54 = memref.load %arg5[%c0_28, %c0_29] : memref<1x1xf32, #tpu.memory_space<smem>>
      memref.store %53, %arg5[%c0_28, %c0_29] : memref<1x1xf32, #tpu.memory_space<smem>>
    } else {
    }
    return
  }
  func.func @transform_0(%arg0: i32) -> (i32, i32) {
    %c0_i32 = arith.constant 0 : i32
    %c0_i32_0 = arith.constant 0 : i32
    return %arg0, %c0_i32 : i32, i32
  }
  func.func @transform_1(%arg0: i32) -> (i32, i32) {
    %c0_i32 = arith.constant 0 : i32
    %c0_i32_0 = arith.constant 0 : i32
    return %arg0, %c0_i32 : i32, i32
  }
  func.func @transform_2(%arg0: i32) -> (i32, i32) {
    %c0_i32 = arith.constant 0 : i32
    %c0_i32_0 = arith.constant 0 : i32
    %c0_i32_1 = arith.constant 0 : i32
    return %c0_i32, %c0_i32_0 : i32, i32
  }
  func.func @transform_3(%arg0: i32) -> (i32, i32) {
    %c0_i32 = arith.constant 0 : i32
    %c0_i32_0 = arith.constant 0 : i32
    %c0_i32_1 = arith.constant 0 : i32
    return %c0_i32, %c0_i32_0 : i32, i32
  }
  func.func @transform_4(%arg0: i32) -> (i32, i32) {
    %c0_i32 = arith.constant 0 : i32
    %c0_i32_0 = arith.constant 0 : i32
    %c0_i32_1 = arith.constant 0 : i32
    return %c0_i32, %c0_i32_0 : i32, i32
  }
}

</mosaic_0001>

<llo_original>
// kernel: fft_loss.1
$region0: #{fft_loss.1}
  #allocation0 [shape = 'u32[]', space=smem, size = 0x4, offset = 0x4, fixed_abs, tag = 'smem constant byte address 0x4 - core index']
  #allocation1 [shape = 'u32[144,128]{1,0:T(1,128)}', space=vmem, size = 0x12000, scoped, tag = 'internal scratch']
  #allocation2 [shape = 'f32[8,256]{1,0:T(8,128)}', space=vmem, size = 0x2000, scoped, tag = 'scratch operand']
  #allocation3 [shape = 'f32[8,256]{1,0:T(8,128)}', space=vmem, size = 0x2000, scoped, tag = 'scratch operand']
  %s0 = inlined_call_operand.vmem [shape: f32[8,256], index: 0, kind: input, shape index: {}]
  %s1 = inlined_call_operand.vmem [shape: f32[8,256], index: 1, kind: input, shape index: {}]
  %s2 = inlined_call_operand.hbm [shape: f32[256,512], index: 2, kind: input, shape index: {}]
  %s3 = inlined_call_operand.hbm [shape: f32[1,1], index: 3, kind: output, shape index: {0}]
  %s4 = inlined_call_operand.hbm [shape: f32[1,1], index: 4, kind: output, shape index: {1}]
  %5 = xla_tuple %s3, %s4
  %s6 = sld [smem:[#allocation0]]
  $region42: #{fft_loss.1} parent=0
    _
  %s8 = ssub.s32 1, %s6
  %s9 = scalar_select 0, %s8, %s6
  $region1: #{fft_loss.1} parent=0
    #allocation4 [shape = 'u8[524288]{0}', space=vmem, size = 0x80000, scoped, tag = 'input window, operand 2, single buffered']
    #allocation5 [shape = 's32[1]{0}', space=sflag, size = 0x4, scoped, tag = 'scoped memory for fft_loss.1']
    #allocation6 [shape = 's32[1]{0}', space=sflag, size = 0x4, scoped, tag = 'scoped memory for fft_loss.1']
    #allocation7 [shape = 'u8[512]{0}', space=smem, size = 0x200, scoped, tag = 'output window, operand 0, single buffered']
    #allocation8 [shape = 'u8[512]{0}', space=smem, size = 0x200, scoped, tag = 'output window, operand 1, single buffered']
    #allocation9 [shape = 's32[1]{0}', space=sflag, size = 0x4, scoped, tag = 'scoped memory for fft_loss.1']
    %10 = vsyncpa [#allocation5], 0
    %11 = vsyncpa [#allocation6], 0
    %12 = vsyncpa [#allocation9], 0
    // Predicated region
    $region2: #{fft_loss.1} parent=1 // pred_check
      _
    $region3: #{fft_loss.1} parent=1 // pred_check_branch
      %14 = sbr.rel (0) target = $region5
    $region4: #{fft_loss.1} parent=1 // pred_region
      _
    $region5: #{fft_loss.1} parent=1 // pred_fallthru
      _
    // Predicated region
    $region6: #{fft_loss.1} parent=1 // pred_check
      _
    $region7: #{fft_loss.1} parent=1 // pred_check_branch
      %16 = sbr.rel (0) target = $region9
    $region8: #{fft_loss.1} parent=1 // pred_region
      _
    $region9: #{fft_loss.1} parent=1 // pred_fallthru
      _
    // Predicated region
    $region10: #{fft_loss.1} parent=1 // pred_check
      _
    $region11: #{fft_loss.1} parent=1 // pred_check_branch
      %18 = sbr.rel (0) target = $region13
    $region12: #{fft_loss.1} parent=1 // pred_region
      %s20 = ssub.s32 16384, 16384
      %21 = vsyncadd [#allocation5], %s20
      %s22 = sshll.u32 [#allocation4], 4
      %s23 = int_to_ptr.vmem [resolvable:$true] %s22
      %28 = dma.hbm_to_vmem [thread:$0]  %s2, 16384, %s23, [#allocation5], 512, 512, 32
    $region13: #{fft_loss.1} parent=1 // pred_fallthru
      _
    // Predicated region
    $region14: #{fft_loss.1} parent=1 // pred_check
      _
    $region15: #{fft_loss.1} parent=1 // pred_check_branch
      %30 = sbr.rel (0) target = $region17
    $region16: #{fft_loss.1} parent=1 // pred_region
      %31 = dma.done [#allocation5], 16384
    $region17: #{fft_loss.1} parent=1 // pred_fallthru
      _
    %p32 = scmp.eq.s32.totalorder 0, 0
    // Predicated region
    $region18: #{fft_loss.1} parent=1 // pred_check
      %p33 = pneg %p32
    $region19: #{fft_loss.1} parent=1 // pred_check_branch
      %35 = sbr.rel (%p33) target = $region21
    $region20: #{fft_loss.1} parent=1 // pred_region
      %36 = vst [vmem:[#allocation2] sm:$0xff] 0.0
      %37 = vst [vmem:[#allocation2 + $0x8] sm:$0xff] 0.0
      %38 = vst [vmem:[#allocation3] sm:$0xff] 0.0
      %39 = vst [vmem:[#allocation3 + $0x8] sm:$0xff] 0.0
    $region21: #{fft_loss.1} parent=1 // pred_fallthru
      _
    %v40 = vld [vmem:[#allocation4] sm:$0xff]
    %v41 = vld [vmem:[#allocation4 + $0x8] sm:$0xff]
    %v42 = vld [vmem:[#allocation4 + $0x10] sm:$0xff]
    %v43 = vld [vmem:[#allocation4 + $0x18] sm:$0xff]
    %v44 = vld [vmem:[#allocation4 + $0x20] sm:$0xff]
    %v45 = vld [vmem:[#allocation4 + $0x28] sm:$0xff]
    %v46 = vld [vmem:[#allocation4 + $0x30] sm:$0xff]
    %v47 = vld [vmem:[#allocation4 + $0x38] sm:$0xff]
    %v48 = vld [vmem:[#allocation4 + $0x40] sm:$0xff]
    %v49 = vld [vmem:[#allocation4 + $0x48] sm:$0xff]
    %v50 = vld [vmem:[#allocation4 + $0x50] sm:$0xff]
    %v51 = vld [vmem:[#allocation4 + $0x58] sm:$0xff]
    %v52 = vld [vmem:[#allocation4 + $0x60] sm:$0xff]
    %v53 = vld [vmem:[#allocation4 + $0x68] sm:$0xff]
    %v54 = vld [vmem:[#allocation4 + $0x70] sm:$0xff]
    %v55 = vld [vmem:[#allocation4 + $0x78] sm:$0xff]
    %v56 = vld [vmem:[#allocation4 + $0x80] sm:$0xff]
    %v57 = vld [vmem:[#allocation4 + $0x88] sm:$0xff]
    %v58 = vld [vmem:[#allocation4 + $0x90] sm:$0xff]
    %v59 = vld [vmem:[#allocation4 + $0x98] sm:$0xff]
    %v60 = vld [vmem:[#allocation4 + $0xa0] sm:$0xff]
    %v61 = vld [vmem:[#allocation4 + $0xa8] sm:$0xff]
    %v62 = vld [vmem:[#allocation4 + $0xb0] sm:$0xff]
    %v63 = vld [vmem:[#allocation4 + $0xb8] sm:$0xff]
    %v64 = vld [vmem:[#allocation4 + $0xc0] sm:$0xff]
    %v65 = vld [vmem:[#allocation4 + $0xc8] sm:$0xff]
    %v66 = vld [vmem:[#allocation4 + $0xd0] sm:$0xff]
    %v67 = vld [vmem:[#allocation4 + $0xd8] sm:$0xff]
    %v68 = vld [vmem:[#allocation4 + $0xe0] sm:$0xff]
    %v69 = vld [vmem:[#allocation4 + $0xe8] sm:$0xff]
    %v70 = vld [vmem:[#allocation4 + $0xf0] sm:$0xff]
    %v71 = vld [vmem:[#allocation4 + $0xf8] sm:$0xff]
    %v72 = vld [vmem:[#allocation4 + $0x100] sm:$0xff]
    %v73 = vld [vmem:[#allocation4 + $0x108] sm:$0xff]
    %v74 = vld [vmem:[#allocation4 + $0x110] sm:$0xff]
    %v75 = vld [vmem:[#allocation4 + $0x118] sm:$0xff]
    %v76 = vld [vmem:[#allocation4 + $0x120] sm:$0xff]
    %v77 = vld [vmem:[#allocation4 + $0x128] sm:$0xff]
    %v78 = vld [vmem:[#allocation4 + $0x130] sm:$0xff]
    %v79 = vld [vmem:[#allocation4 + $0x138] sm:$0xff]
    %v80 = vld [vmem:[#allocation4 + $0x140] sm:$0xff]
    %v81 = vld [vmem:[#allocation4 + $0x148] sm:$0xff]
    %v82 = vld [vmem:[#allocation4 + $0x150] sm:$0xff]
    %v83 = vld [vmem:[#allocation4 + $0x158] sm:$0xff]
    %v84 = vld [vmem:[#allocation4 + $0x160] sm:$0xff]
    %v85 = vld [vmem:[#allocation4 + $0x168] sm:$0xff]
    %v86 = vld [vmem:[#allocation4 + $0x170] sm:$0xff]
    %v87 = vld [vmem:[#allocation4 + $0x178] sm:$0xff]
    %v88 = vld [vmem:[#allocation4 + $0x180] sm:$0xff]
    %v89 = vld [vmem:[#allocation4 + $0x188] sm:$0xff]
    %v90 = vld [vmem:[#allocation4 + $0x190] sm:$0xff]
    %v91 = vld [vmem:[#allocation4 + $0x198] sm:$0xff]
    %v92 = vld [vmem:[#allocation4 + $0x1a0] sm:$0xff]
    %v93 = vld [vmem:[#allocation4 + $0x1a8] sm:$0xff]
    %v94 = vld [vmem:[#allocation4 + $0x1b0] sm:$0xff]
    %v95 = vld [vmem:[#allocation4 + $0x1b8] sm:$0xff]
    %v96 = vld [vmem:[#allocation4 + $0x1c0] sm:$0xff]
    %v97 = vld [vmem:[#allocation4 + $0x1c8] sm:$0xff]
    %v98 = vld [vmem:[#allocation4 + $0x1d0] sm:$0xff]
    %v99 = vld [vmem:[#allocation4 + $0x1d8] sm:$0xff]
    %v100 = vld [vmem:[#allocation4 + $0x1e0] sm:$0xff]
    %v101 = vld [vmem:[#allocation4 + $0x1e8] sm:$0xff]
    %v102 = vld [vmem:[#allocation4 + $0x1f0] sm:$0xff]
    %v103 = vld [vmem:[#allocation4 + $0x1f8] sm:$0xff]
    %v104 = vld [vmem:[#allocation4 + $0x200] sm:$0xff]
    %v105 = vld [vmem:[#allocation4 + $0x208] sm:$0xff]
    %v106 = vld [vmem:[#allocation4 + $0x210] sm:$0xff]
    %v107 = vld [vmem:[#allocation4 + $0x218] sm:$0xff]
    %v108 = vld [vmem:[#allocation4 + $0x220] sm:$0xff]
    %v109 = vld [vmem:[#allocation4 + $0x228] sm:$0xff]
    %v110 = vld [vmem:[#allocation4 + $0x230] sm:$0xff]
    %v111 = vld [vmem:[#allocation4 + $0x238] sm:$0xff]
    %v112 = vld [vmem:[#allocation4 + $0x240] sm:$0xff]
    %v113 = vld [vmem:[#allocation4 + $0x248] sm:$0xff]
    %v114 = vld [vmem:[#allocation4 + $0x250] sm:$0xff]
    %v115 = vld [vmem:[#allocation4 + $0x258] sm:$0xff]
    %v116 = vld [vmem:[#allocation4 + $0x260] sm:$0xff]
    %v117 = vld [vmem:[#allocation4 + $0x268] sm:$0xff]
    %v118 = vld [vmem:[#allocation4 + $0x270] sm:$0xff]
    %v119 = vld [vmem:[#allocation4 + $0x278] sm:$0xff]
    %v120 = vld [vmem:[#allocation4 + $0x280] sm:$0xff]
    %v121 = vld [vmem:[#allocation4 + $0x288] sm:$0xff]
    %v122 = vld [vmem:[#allocation4 + $0x290] sm:$0xff]
    %v123 = vld [vmem:[#allocation4 + $0x298] sm:$0xff]
    %v124 = vld [vmem:[#allocation4 + $0x2a0] sm:$0xff]
    %v125 = vld [vmem:[#allocation4 + $0x2a8] sm:$0xff]
    %v126 = vld [vmem:[#allocation4 + $0x2b0] sm:$0xff]
    %v127 = vld [vmem:[#allocation4 + $0x2b8] sm:$0xff]
    %v128 = vld [vmem:[#allocation4 + $0x2c0] sm:$0xff]
    %v129 = vld [vmem:[#allocation4 + $0x2c8] sm:$0xff]
    %v130 = vld [vmem:[#allocation4 + $0x2d0] sm:$0xff]
    %v131 = vld [vmem:[#allocation4 + $0x2d8] sm:$0xff]
    %v132 = vld [vmem:[#allocation4 + $0x2e0] sm:$0xff]
    %v133 = vld [vmem:[#allocation4 + $0x2e8] sm:$0xff]
    %v134 = vld [vmem:[#allocation4 + $0x2f0] sm:$0xff]
    %v135 = vld [vmem:[#allocation4 + $0x2f8] sm:$0xff]
    %v136 = vld [vmem:[#allocation4 + $0x300] sm:$0xff]
    %v137 = vld [vmem:[#allocation4 + $0x308] sm:$0xff]
    %v138 = vld [vmem:[#allocation4 + $0x310] sm:$0xff]
    %v139 = vld [vmem:[#allocation4 + $0x318] sm:$0xff]
    %v140 = vld [vmem:[#allocation4 + $0x320] sm:$0xff]
    %v141 = vld [vmem:[#allocation4 + $0x328] sm:$0xff]
    %v142 = vld [vmem:[#allocation4 + $0x330] sm:$0xff]
    %v143 = vld [vmem:[#allocation4 + $0x338] sm:$0xff]
    %v144 = vld [vmem:[#allocation4 + $0x340] sm:$0xff]
    %v145 = vld [vmem:[#allocation4 + $0x348] sm:$0xff]
    %v146 = vld [vmem:[#allocation4 + $0x350] sm:$0xff]
    %v147 = vld [vmem:[#allocation4 + $0x358] sm:$0xff]
    %v148 = vld [vmem:[#allocation4 + $0x360] sm:$0xff]
    %v149 = vld [vmem:[#allocation4 + $0x368] sm:$0xff]
    %v150 = vld [vmem:[#allocation4 + $0x370] sm:$0xff]
    %v151 = vld [vmem:[#allocation4 + $0x378] sm:$0xff]
    %v152 = vld [vmem:[#allocation4 + $0x380] sm:$0xff]
    %v153 = vld [vmem:[#allocation4 + $0x388] sm:$0xff]
    %v154 = vld [vmem:[#allocation4 + $0x390] sm:$0xff]
    %v155 = vld [vmem:[#allocation4 + $0x398] sm:$0xff]
    %v156 = vld [vmem:[#allocation4 + $0x3a0] sm:$0xff]
    %v157 = vld [vmem:[#allocation4 + $0x3a8] sm:$0xff]
    %v158 = vld [vmem:[#allocation4 + $0x3b0] sm:$0xff]
    %v159 = vld [vmem:[#allocation4 + $0x3b8] sm:$0xff]
    %v160 = vld [vmem:[#allocation4 + $0x3c0] sm:$0xff]
    %v161 = vld [vmem:[#allocation4 + $0x3c8] sm:$0xff]
    %v162 = vld [vmem:[#allocation4 + $0x3d0] sm:$0xff]
    %v163 = vld [vmem:[#allocation4 + $0x3d8] sm:$0xff]
    %v164 = vld [vmem:[#allocation4 + $0x3e0] sm:$0xff]
    %v165 = vld [vmem:[#allocation4 + $0x3e8] sm:$0xff]
    %v166 = vld [vmem:[#allocation4 + $0x3f0] sm:$0xff]
    %v167 = vld [vmem:[#allocation4 + $0x3f8] sm:$0xff]
    %v168 = vld [vmem:[%s0] sm:$0xff]
    %v169 = vld [vmem:[%s0 + $0x8] sm:$0xff]
    %v170 = vld [vmem:[%s1] sm:$0xff]
    %v171 = vld [vmem:[%s1 + $0x8] sm:$0xff]
    %v172 = vlaneseq
    %v173 = vand.u32 %v172, 127
    %v174 = vadd.s32 %v173, 128
    %v175 = vadd.s32 %v173, 256
    %v176 = vadd.s32 %v173, 384
    %vm177 = vcmp.eq.s32.totalorder %v173, 0
    %vm178 = vcmp.eq.s32.totalorder %v174, 0
    %vm179 = vcmp.eq.s32.totalorder %v175, 0
    %vm180 = vcmp.eq.s32.totalorder %v176, 0
    %v181 = vsel %vm177, 2.56e-06, 0.0
    %v182 = vsel %vm178, 2.56e-06, 0.0
    %v183 = vsel %vm179, 2.56e-06, 0.0
    %v184 = vsel %vm180, 2.56e-06, 0.0
    %185 = vmatprep.subr.mxu0 %v41
    %186 = vmatpush1.msra.mxu0 %v40
    %187 = vmatprep.subr.mxu0 %v45
    %188 = vmatpush1.msra.mxu0 %v44
    %189 = vmatprep.subr.mxu0 %v49
    %190 = vmatpush1.msra.mxu0 %v48
    %191 = vmatprep.subr.mxu0 %v53
    %192 = vmatpush1.msra.mxu0 %v52
    %193 = vmatprep.subr.mxu0 %v57
    %194 = vmatpush1.msra.mxu0 %v56
    %195 = vmatprep.subr.mxu0 %v61
    %196 = vmatpush1.msra.mxu0 %v60
    %197 = vmatprep.subr.mxu0 %v65
    %198 = vmatpush1.msra.mxu0 %v64
    %199 = vmatprep.subr.mxu0 %v69
    %200 = vmatpush1.msra.mxu0 %v68
    %201 = vmatprep.subr.mxu0 %v73
    %202 = vmatpush1.msra.mxu0 %v72
    %203 = vmatprep.subr.mxu0 %v77
    %204 = vmatpush1.msra.mxu0 %v76
    %205 = vmatprep.subr.mxu0 %v81
    %206 = vmatpush1.msra.mxu0 %v80
    %207 = vmatprep.subr.mxu0 %v85
    %208 = vmatpush1.msra.mxu0 %v84
    %209 = vmatprep.subr.mxu0 %v89
    %210 = vmatpush1.msra.mxu0 %v88
    %211 = vmatprep.subr.mxu0 %v93
    %212 = vmatpush1.msra.mxu0 %v92
    %213 = vmatprep.subr.mxu0 %v97
    %214 = vmatpush1.msra.mxu0 %v96
    %215 = vmatprep.subr.mxu0 %v101
    %216 = vmatpush1.msra.mxu0 %v100
    %217 = vmatprep.subr.mxu0 %v105
    %218 = vmatpush1.msra.mxu0 %v104
    %219 = vmatprep.subr.mxu0 %v109
    %220 = vmatpush1.msra.mxu0 %v108
    %221 = vmatprep.subr.mxu0 %v113
    %222 = vmatpush1.msra.mxu0 %v112
    %223 = vmatprep.subr.mxu0 %v117
    %224 = vmatpush1.msra.mxu0 %v116
    %225 = vmatprep.subr.mxu0 %v121
    %226 = vmatpush1.msra.mxu0 %v120
    %227 = vmatprep.subr.mxu0 %v125
    %228 = vmatpush1.msra.mxu0 %v124
    %229 = vmatprep.subr.mxu0 %v129
    %230 = vmatpush1.msra.mxu0 %v128
    %231 = vmatprep.subr.mxu0 %v133
    %232 = vmatpush1.msra.mxu0 %v132
    %233 = vmatprep.subr.mxu0 %v137
    %234 = vmatpush1.msra.mxu0 %v136
    %235 = vmatprep.subr.mxu0 %v141
    %236 = vmatpush1.msra.mxu0 %v140
    %237 = vmatprep.subr.mxu0 %v145
    %238 = vmatpush1.msra.mxu0 %v144
    %239 = vmatprep.subr.mxu0 %v149
    %240 = vmatpush1.msra.mxu0 %v148
    %241 = vmatprep.subr.mxu0 %v153
    %242 = vmatpush1.msra.mxu0 %v152
    %243 = vmatprep.subr.mxu0 %v157
    %244 = vmatpush1.msra.mxu0 %v156
    %245 = vmatprep.subr.mxu0 %v161
    %246 = vmatpush1.msra.mxu0 %v160
    %247 = vmatprep.subr.mxu0 %v165
    %248 = vmatpush1.msra.mxu0 %v164
    %249 = vmatprep.mubr.f32.mxu0 %v169
    %250 = vmatmul.mubr.f32.gmra.mrb[0].mxu0 %v168
    %v251 = vpop.f32.mrb[0].mxu0
    %v252 = vadd.f32 %v181, %v251
    %v253 = vpop.f32.mrb[0].mxu0
    %v254 = vadd.f32 %v182, %v253
    %255 = vdwg.mxu0
    %256 = vmatprep.subr.mxu0 %v43
    %257 = vmatpush1.msra.mxu0 %v42
    %258 = vmatprep.subr.mxu0 %v47
    %259 = vmatpush1.msra.mxu0 %v46
    %260 = vmatprep.subr.mxu0 %v51
    %261 = vmatpush1.msra.mxu0 %v50
    %262 = vmatprep.subr.mxu0 %v55
    %263 = vmatpush1.msra.mxu0 %v54
    %264 = vmatprep.subr.mxu0 %v59
    %265 = vmatpush1.msra.mxu0 %v58
    %266 = vmatprep.subr.mxu0 %v63
    %267 = vmatpush1.msra.mxu0 %v62
    %268 = vmatprep.subr.mxu0 %v67
    %269 = vmatpush1.msra.mxu0 %v66
    %270 = vmatprep.subr.mxu0 %v71
    %271 = vmatpush1.msra.mxu0 %v70
    %272 = vmatprep.subr.mxu0 %v75
    %273 = vmatpush1.msra.mxu0 %v74
    %274 = vmatprep.subr.mxu0 %v79
    %275 = vmatpush1.msra.mxu0 %v78
    %276 = vmatprep.subr.mxu0 %v83
    %277 = vmatpush1.msra.mxu0 %v82
    %278 = vmatprep.subr.mxu0 %v87
    %279 = vmatpush1.msra.mxu0 %v86
    %280 = vmatprep.subr.mxu0 %v91
    %281 = vmatpush1.msra.mxu0 %v90
    %282 = vmatprep.subr.mxu0 %v95
    %283 = vmatpush1.msra.mxu0 %v94
    %284 = vmatprep.subr.mxu0 %v99
    %285 = vmatpush1.msra.mxu0 %v98
    %286 = vmatprep.subr.mxu0 %v103
    %287 = vmatpush1.msra.mxu0 %v102
    %288 = vmatprep.subr.mxu0 %v107
    %289 = vmatpush1.msra.mxu0 %v106
    %290 = vmatprep.subr.mxu0 %v111
    %291 = vmatpush1.msra.mxu0 %v110
    %292 = vmatprep.subr.mxu0 %v115
    %293 = vmatpush1.msra.mxu0 %v114
    %294 = vmatprep.subr.mxu0 %v119
    %295 = vmatpush1.msra.mxu0 %v118
    %296 = vmatprep.subr.mxu0 %v123
    %297 = vmatpush1.msra.mxu0 %v122
    %298 = vmatprep.subr.mxu0 %v127
    %299 = vmatpush1.msra.mxu0 %v126
    %300 = vmatprep.subr.mxu0 %v131
    %301 = vmatpush1.msra.mxu0 %v130
    %302 = vmatprep.subr.mxu0 %v135
    %303 = vmatpush1.msra.mxu0 %v134
    %304 = vmatprep.subr.mxu0 %v139
    %305 = vmatpush1.msra.mxu0 %v138
    %306 = vmatprep.subr.mxu0 %v143
    %307 = vmatpush1.msra.mxu0 %v142
    %308 = vmatprep.subr.mxu0 %v147
    %309 = vmatpush1.msra.mxu0 %v146
    %310 = vmatprep.subr.mxu0 %v151
    %311 = vmatpush1.msra.mxu0 %v150
    %312 = vmatprep.subr.mxu0 %v155
    %313 = vmatpush1.msra.mxu0 %v154
    %314 = vmatprep.subr.mxu0 %v159
    %315 = vmatpush1.msra.mxu0 %v158
    %316 = vmatprep.subr.mxu0 %v163
    %317 = vmatpush1.msra.mxu0 %v162
    %318 = vmatprep.subr.mxu0 %v167
    %319 = vmatpush1.msra.mxu0 %v166
    %320 = vmatprep.mubr.f32.mxu0 %v169
    %321 = vmatmul.mubr.f32.gmra.mrb[0].mxu0 %v168
    %v322 = vpop.f32.mrb[0].mxu0
    %v323 = vadd.f32 %v183, %v322
    %v324 = vpop.f32.mrb[0].mxu0
    %v325 = vadd.f32 %v184, %v324
    %326 = vdwg.mxu0
    %327 = vmatprep.subr.mxu0 %v41
    %328 = vmatpush1.msra.mxu0 %v40
    %329 = vmatprep.subr.mxu0 %v45
    %330 = vmatpush1.msra.mxu0 %v44
    %331 = vmatprep.subr.mxu0 %v49
    %332 = vmatpush1.msra.mxu0 %v48
    %333 = vmatprep.subr.mxu0 %v53
    %334 = vmatpush1.msra.mxu0 %v52
    %335 = vmatprep.subr.mxu0 %v57
    %336 = vmatpush1.msra.mxu0 %v56
    %337 = vmatprep.subr.mxu0 %v61
    %338 = vmatpush1.msra.mxu0 %v60
    %339 = vmatprep.subr.mxu0 %v65
    %340 = vmatpush1.msra.mxu0 %v64
    %341 = vmatprep.subr.mxu0 %v69
    %342 = vmatpush1.msra.mxu0 %v68
    %343 = vmatprep.subr.mxu0 %v73
    %344 = vmatpush1.msra.mxu0 %v72
    %345 = vmatprep.subr.mxu0 %v77
    %346 = vmatpush1.msra.mxu0 %v76
    %347 = vmatprep.subr.mxu0 %v81
    %348 = vmatpush1.msra.mxu0 %v80
    %349 = vmatprep.subr.mxu0 %v85
    %350 = vmatpush1.msra.mxu0 %v84
    %351 = vmatprep.subr.mxu0 %v89
    %352 = vmatpush1.msra.mxu0 %v88
    %353 = vmatprep.subr.mxu0 %v93
    %354 = vmatpush1.msra.mxu0 %v92
    %355 = vmatprep.subr.mxu0 %v97
    %356 = vmatpush1.msra.mxu0 %v96
    %357 = vmatprep.subr.mxu0 %v101
    %358 = vmatpush1.msra.mxu0 %v100
    %359 = vmatprep.subr.mxu0 %v105
    %360 = vmatpush1.msra.mxu0 %v104
    %361 = vmatprep.subr.mxu0 %v109
    %362 = vmatpush1.msra.mxu0 %v108
    %363 = vmatprep.subr.mxu0 %v113
    %364 = vmatpush1.msra.mxu0 %v112
    %365 = vmatprep.subr.mxu0 %v117
    %366 = vmatpush1.msra.mxu0 %v116
    %367 = vmatprep.subr.mxu0 %v121
    %368 = vmatpush1.msra.mxu0 %v120
    %369 = vmatprep.subr.mxu0 %v125
    %370 = vmatpush1.msra.mxu0 %v124
    %371 = vmatprep.subr.mxu0 %v129
    %372 = vmatpush1.msra.mxu0 %v128
    %373 = vmatprep.subr.mxu0 %v133
    %374 = vmatpush1.msra.mxu0 %v132
    %375 = vmatprep.subr.mxu0 %v137
    %376 = vmatpush1.msra.mxu0 %v136
    %377 = vmatprep.subr.mxu0 %v141
    %378 = vmatpush1.msra.mxu0 %v140
    %379 = vmatprep.subr.mxu0 %v145
    %380 = vmatpush1.msra.mxu0 %v144
    %381 = vmatprep.subr.mxu0 %v149
    %382 = vmatpush1.msra.mxu0 %v148
    %383 = vmatprep.subr.mxu0 %v153
    %384 = vmatpush1.msra.mxu0 %v152
    %385 = vmatprep.subr.mxu0 %v157
    %386 = vmatpush1.msra.mxu0 %v156
    %387 = vmatprep.subr.mxu0 %v161
    %388 = vmatpush1.msra.mxu0 %v160
    %389 = vmatprep.subr.mxu0 %v165
    %390 = vmatpush1.msra.mxu0 %v164
    %391 = vmatprep.mubr.f32.mxu0 %v171
    %392 = vmatmul.mubr.f32.gmra.mrb[0].mxu0 %v170
    %v393 = vpop.f32.mrb[0].mxu0
    %v394 = vadd.f32 %v181, %v393
    %v395 = vpop.f32.mrb[0].mxu0
    %v396 = vadd.f32 %v182, %v395
    %397 = vdwg.mxu0
    %398 = vmatprep.subr.mxu0 %v43
    %399 = vmatpush1.msra.mxu0 %v42
    %400 = vmatprep.subr.mxu0 %v47
    %401 = vmatpush1.msra.mxu0 %v46
    %402 = vmatprep.subr.mxu0 %v51
    %403 = vmatpush1.msra.mxu0 %v50
    %404 = vmatprep.subr.mxu0 %v55
    %405 = vmatpush1.msra.mxu0 %v54
    %406 = vmatprep.subr.mxu0 %v59
    %407 = vmatpush1.msra.mxu0 %v58
    %408 = vmatprep.subr.mxu0 %v63
    %409 = vmatpush1.msra.mxu0 %v62
    %410 = vmatprep.subr.mxu0 %v67
    %411 = vmatpush1.msra.mxu0 %v66
    %412 = vmatprep.subr.mxu0 %v71
    %413 = vmatpush1.msra.mxu0 %v70
    %414 = vmatprep.subr.mxu0 %v75
    %415 = vmatpush1.msra.mxu0 %v74
    %416 = vmatprep.subr.mxu0 %v79
    %417 = vmatpush1.msra.mxu0 %v78
    %418 = vmatprep.subr.mxu0 %v83
    %419 = vmatpush1.msra.mxu0 %v82
    %420 = vmatprep.subr.mxu0 %v87
    %421 = vmatpush1.msra.mxu0 %v86
    %422 = vmatprep.subr.mxu0 %v91
    %423 = vmatpush1.msra.mxu0 %v90
    %424 = vmatprep.subr.mxu0 %v95
    %425 = vmatpush1.msra.mxu0 %v94
    %426 = vmatprep.subr.mxu0 %v99
    %427 = vmatpush1.msra.mxu0 %v98
    %428 = vmatprep.subr.mxu0 %v103
    %429 = vmatpush1.msra.mxu0 %v102
    %430 = vmatprep.subr.mxu0 %v107
    %431 = vmatpush1.msra.mxu0 %v106
    %432 = vmatprep.subr.mxu0 %v111
    %433 = vmatpush1.msra.mxu0 %v110
    %434 = vmatprep.subr.mxu0 %v115
    %435 = vmatpush1.msra.mxu0 %v114
    %436 = vmatprep.subr.mxu0 %v119
    %437 = vmatpush1.msra.mxu0 %v118
    %438 = vmatprep.subr.mxu0 %v123
    %439 = vmatpush1.msra.mxu0 %v122
    %440 = vmatprep.subr.mxu0 %v127
    %441 = vmatpush1.msra.mxu0 %v126
    %442 = vmatprep.subr.mxu0 %v131
    %443 = vmatpush1.msra.mxu0 %v130
    %444 = vmatprep.subr.mxu0 %v135
    %445 = vmatpush1.msra.mxu0 %v134
    %446 = vmatprep.subr.mxu0 %v139
    %447 = vmatpush1.msra.mxu0 %v138
    %448 = vmatprep.subr.mxu0 %v143
    %449 = vmatpush1.msra.mxu0 %v142
    %450 = vmatprep.subr.mxu0 %v147
    %451 = vmatpush1.msra.mxu0 %v146
    %452 = vmatprep.subr.mxu0 %v151
    %453 = vmatpush1.msra.mxu0 %v150
    %454 = vmatprep.subr.mxu0 %v155
    %455 = vmatpush1.msra.mxu0 %v154
    %456 = vmatprep.subr.mxu0 %v159
    %457 = vmatpush1.msra.mxu0 %v158
    %458 = vmatprep.subr.mxu0 %v163
    %459 = vmatpush1.msra.mxu0 %v162
    %460 = vmatprep.subr.mxu0 %v167
    %461 = vmatpush1.msra.mxu0 %v166
    %462 = vmatprep.mubr.f32.mxu0 %v171
    %463 = vmatmul.mubr.f32.gmra.mrb[0].mxu0 %v170
    %v464 = vpop.f32.mrb[0].mxu0
    %v465 = vadd.f32 %v183, %v464
    %v466 = vpop.f32.mrb[0].mxu0
    %v467 = vadd.f32 %v184, %v466
    %468 = vdwg.mxu0
    %v469 = vmul.f32 %v252, %v252
    %v470 = vmul.f32 %v254, %v254
    %v471 = vmul.f32 %v323, %v323
    %v472 = vmul.f32 %v325, %v325
    %v473 = vadd.f32 %v469, %v471
    %v474 = vadd.f32 %v470, %v472
    %v475 = vrsqrt.pop %v473
    %v476 = vmul.f32 %v473, %v475
    %vm477 = vcmp.eq.f32.partialorder %v473, inf
    %v478 = vsel %vm477, %v473, %v476
    %vm479 = vcmp.eq.f32.partialorder %v473, 0.0
    %v480 = vand.u32 %v473, 2147483648
    %v481 = vsel %vm479, %v480, %v478
    %v482 = vrsqrt.pop %v474
    %v483 = vmul.f32 %v474, %v482
    %vm484 = vcmp.eq.f32.partialorder %v474, inf
    %v485 = vsel %vm484, %v474, %v483
    %vm486 = vcmp.eq.f32.partialorder %v474, 0.0
    %v487 = vand.u32 %v474, 2147483648
    %v488 = vsel %vm486, %v487, %v485
    %v489 = vmul.f32 %v394, %v394
    %v490 = vmul.f32 %v396, %v396
    %v491 = vmul.f32 %v465, %v465
    %v492 = vmul.f32 %v467, %v467
    %v493 = vadd.f32 %v489, %v491
    %v494 = vadd.f32 %v490, %v492
    %v495 = vrsqrt.pop %v493
    %v496 = vmul.f32 %v493, %v495
    %vm497 = vcmp.eq.f32.partialorder %v493, inf
    %v498 = vsel %vm497, %v493, %v496
    %vm499 = vcmp.eq.f32.partialorder %v493, 0.0
    %v500 = vand.u32 %v493, 2147483648
    %v501 = vsel %vm499, %v500, %v498
    %v502 = vrsqrt.pop %v494
    %v503 = vmul.f32 %v494, %v502
    %vm504 = vcmp.eq.f32.partialorder %v494, inf
    %v505 = vsel %vm504, %v494, %v503
    %vm506 = vcmp.eq.f32.partialorder %v494, 0.0
    %v507 = vand.u32 %v494, 2147483648
    %v508 = vsel %vm506, %v507, %v505
    %v509 = vsub.f32 %v481, %v501
    %v510 = vsub.f32 %v488, %v508
    %v511 = vld [vmem:[#allocation2] sm:$0xff]
    %v512 = vld [vmem:[#allocation2 + $0x8] sm:$0xff]
    %v513 = vmul.f32 %v509, %v509
    %v514 = vmul.f32 %v510, %v510
    %v515 = vadd.f32 %v511, %v513
    %v516 = vadd.f32 %v512, %v514
    %517 = vst [vmem:[#allocation2] sm:$0xff] %v515
    %518 = vst [vmem:[#allocation2 + $0x8] sm:$0xff] %v516
    %v519 = vand.u32 2147483647, %v252
    %v520 = vand.u32 2147483647, %v323
    %v521 = vmin.f32 %v519, %v520
    %v522 = vmax.f32 %v519, %v520
    %v523 = vrcp.pop %v522
    %v524 = vmul.f32 %v521, %v523
    %v525 = vmul.f32 %v524, %v524
    %v526 = vmul.f32 0.002785687, %v525
    %v527 = vadd.f32 %v526, -0.015866
    %v528 = vmul.f32 %v527, %v525
    %v529 = vadd.f32 %v528, 0.04247222
    %v530 = vmul.f32 %v529, %v525
    %v531 = vadd.f32 %v530, -0.074975304
    %v532 = vmul.f32 %v531, %v525
    %v533 = vadd.f32 %v532, 0.1064488
    %v534 = vmul.f32 %v533, %v525
    %v535 = vadd.f32 %v534, -0.14207031
    %v536 = vmul.f32 %v535, %v525
    %v537 = vadd.f32 %v536, 0.19993454
    %v538 = vmul.f32 %v537, %v525
    %v539 = vadd.f32 %v538, -0.33333147
    %v540 = vmul.f32 %v539, %v525
    %v541 = vmul.f32 %v540, %v524
    %v542 = vadd.f32 %v541, %v524
    %vm543 = vcmp.gt.f32.partialorder %v520, %v519
    %v544 = vsub.f32 1.5707964, %v542
    %v545 = vsel %vm543, %v544, %v542
    %vm546 = vcmp.lt.f32.partialorder %v252, 0.0
    %v547 = vsub.f32 3.1415927, %v545
    %v548 = vsel %vm546, %v547, %v545
    %vm549 = vcmp.lt.s32.totalorder %v252, 0
    %v550 = vsel %vm549, 3.1415927, 0.0
    %vm551 = vcmp.eq.f32.partialorder %v323, 0.0
    %v552 = vsel %vm551, %v550, %v548
    %vm553 = vcmp.ne.f32.partialorder %v252, %v252
    %vm554 = vcmp.ne.f32.partialorder %v323, %v323
    %vm555 = vmor %vm553, %vm554
    %v556 = vsel %vm555, nan, %v552
    %vm557 = vcmp.lt.f32.partialorder %v252, 0.0
    %v558 = vsel %vm557, 2.3561945, 0.7853982
    %vm559 = vcmp.eq.s32.totalorder %v519, inf
    %vm560 = vcmp.eq.s32.totalorder %v520, inf
    %vm561 = vmand %vm559, %vm560
    %v562 = vsel %vm561, %v558, %v556
    %v563 = vand.u32 2147483647, %v562
    %v564 = vand.u32 %v323, 2147483648
    %v565 = vor.u32 %v563, %v564
    %v566 = vand.u32 2147483647, %v254
    %v567 = vand.u32 2147483647, %v325
    %v568 = vmin.f32 %v566, %v567
    %v569 = vmax.f32 %v566, %v567
    %v570 = vrcp.pop %v569
    %v571 = vmul.f32 %v568, %v570
    %v572 = vmul.f32 %v571, %v571
    %v573 = vmul.f32 0.002785687, %v572
    %v574 = vadd.f32 %v573, -0.015866
    %v575 = vmul.f32 %v574, %v572
    %v576 = vadd.f32 %v575, 0.04247222
    %v577 = vmul.f32 %v576, %v572
    %v578 = vadd.f32 %v577, -0.074975304
    %v579 = vmul.f32 %v578, %v572
    %v580 = vadd.f32 %v579, 0.1064488
    %v581 = vmul.f32 %v580, %v572
    %v582 = vadd.f32 %v581, -0.14207031
    %v583 = vmul.f32 %v582, %v572
    %v584 = vadd.f32 %v583, 0.19993454
    %v585 = vmul.f32 %v584, %v572
    %v586 = vadd.f32 %v585, -0.33333147
    %v587 = vmul.f32 %v586, %v572
    %v588 = vmul.f32 %v587, %v571
    %v589 = vadd.f32 %v588, %v571
    %vm590 = vcmp.gt.f32.partialorder %v567, %v566
    %v591 = vsub.f32 1.5707964, %v589
    %v592 = vsel %vm590, %v591, %v589
    %vm593 = vcmp.lt.f32.partialorder %v254, 0.0
    %v594 = vsub.f32 3.1415927, %v592
    %v595 = vsel %vm593, %v594, %v592
    %vm596 = vcmp.lt.s32.totalorder %v254, 0
    %v597 = vsel %vm596, 3.1415927, 0.0
    %vm598 = vcmp.eq.f32.partialorder %v325, 0.0
    %v599 = vsel %vm598, %v597, %v595
    %vm600 = vcmp.ne.f32.partialorder %v254, %v254
    %vm601 = vcmp.ne.f32.partialorder %v325, %v325
    %vm602 = vmor %vm600, %vm601
    %v603 = vsel %vm602, nan, %v599
    %vm604 = vcmp.lt.f32.partialorder %v254, 0.0
    %v605 = vsel %vm604, 2.3561945, 0.7853982
    %vm606 = vcmp.eq.s32.totalorder %v566, inf
    %vm607 = vcmp.eq.s32.totalorder %v567, inf
    %vm608 = vmand %vm606, %vm607
    %v609 = vsel %vm608, %v605, %v603
    %v610 = vand.u32 2147483647, %v609
    %v611 = vand.u32 %v325, 2147483648
    %v612 = vor.u32 %v610, %v611
    %v613 = vand.u32 2147483647, %v394
    %v614 = vand.u32 2147483647, %v465
    %v615 = vmin.f32 %v613, %v614
    %v616 = vmax.f32 %v613, %v614
    %v617 = vrcp.pop %v616
    %v618 = vmul.f32 %v615, %v617
    %v619 = vmul.f32 %v618, %v618
    %v620 = vmul.f32 0.002785687, %v619
    %v621 = vadd.f32 %v620, -0.015866
    %v622 = vmul.f32 %v621, %v619
    %v623 = vadd.f32 %v622, 0.04247222
    %v624 = vmul.f32 %v623, %v619
    %v625 = vadd.f32 %v624, -0.074975304
    %v626 = vmul.f32 %v625, %v619
    %v627 = vadd.f32 %v626, 0.1064488
    %v628 = vmul.f32 %v627, %v619
    %v629 = vadd.f32 %v628, -0.14207031
    %v630 = vmul.f32 %v629, %v619
    %v631 = vadd.f32 %v630, 0.19993454
    %v632 = vmul.f32 %v631, %v619
    %v633 = vadd.f32 %v632, -0.33333147
    %v634 = vmul.f32 %v633, %v619
    %v635 = vmul.f32 %v634, %v618
    %v636 = vadd.f32 %v635, %v618
    %vm637 = vcmp.gt.f32.partialorder %v614, %v613
    %v638 = vsub.f32 1.5707964, %v636
    %v639 = vsel %vm637, %v638, %v636
    %vm640 = vcmp.lt.f32.partialorder %v394, 0.0
    %v641 = vsub.f32 3.1415927, %v639
    %v642 = vsel %vm640, %v641, %v639
    %vm643 = vcmp.lt.s32.totalorder %v394, 0
    %v644 = vsel %vm643, 3.1415927, 0.0
    %vm645 = vcmp.eq.f32.partialorder %v465, 0.0
    %v646 = vsel %vm645, %v644, %v642
    %vm647 = vcmp.ne.f32.partialorder %v394, %v394
    %vm648 = vcmp.ne.f32.partialorder %v465, %v465
    %vm649 = vmor %vm647, %vm648
    %v650 = vsel %vm649, nan, %v646
    %vm651 = vcmp.lt.f32.partialorder %v394, 0.0
    %v652 = vsel %vm651, 2.3561945, 0.7853982
    %vm653 = vcmp.eq.s32.totalorder %v613, inf
    %vm654 = vcmp.eq.s32.totalorder %v614, inf
    %vm655 = vmand %vm653, %vm654
    %v656 = vsel %vm655, %v652, %v650
    %v657 = vand.u32 2147483647, %v656
    %v658 = vand.u32 %v465, 2147483648
    %v659 = vor.u32 %v657, %v658
    %v660 = vand.u32 2147483647, %v396
    %v661 = vand.u32 2147483647, %v467
    %v662 = vmin.f32 %v660, %v661
    %v663 = vmax.f32 %v660, %v661
    %v664 = vrcp.pop %v663
    %v665 = vmul.f32 %v662, %v664
    %v666 = vmul.f32 %v665, %v665
    %v667 = vmul.f32 0.002785687, %v666
    %v668 = vadd.f32 %v667, -0.015866
    %v669 = vmul.f32 %v668, %v666
    %v670 = vadd.f32 %v669, 0.04247222
    %v671 = vmul.f32 %v670, %v666
    %v672 = vadd.f32 %v671, -0.074975304
    %v673 = vmul.f32 %v672, %v666
    %v674 = vadd.f32 %v673, 0.1064488
    %v675 = vmul.f32 %v674, %v666
    %v676 = vadd.f32 %v675, -0.14207031
    %v677 = vmul.f32 %v676, %v666
    %v678 = vadd.f32 %v677, 0.19993454
    %v679 = vmul.f32 %v678, %v666
    %v680 = vadd.f32 %v679, -0.33333147
    %v681 = vmul.f32 %v680, %v666
    %v682 = vmul.f32 %v681, %v665
    %v683 = vadd.f32 %v682, %v665
    %vm684 = vcmp.gt.f32.partialorder %v661, %v660
    %v685 = vsub.f32 1.5707964, %v683
    %v686 = vsel %vm684, %v685, %v683
    %vm687 = vcmp.lt.f32.partialorder %v396, 0.0
    %v688 = vsub.f32 3.1415927, %v686
    %v689 = vsel %vm687, %v688, %v686
    %vm690 = vcmp.lt.s32.totalorder %v396, 0
    %v691 = vsel %vm690, 3.1415927, 0.0
    %vm692 = vcmp.eq.f32.partialorder %v467, 0.0
    %v693 = vsel %vm692, %v691, %v689
    %vm694 = vcmp.ne.f32.partialorder %v396, %v396
    %vm695 = vcmp.ne.f32.partialorder %v467, %v467
    %vm696 = vmor %vm694, %vm695
    %v697 = vsel %vm696, nan, %v693
    %vm698 = vcmp.lt.f32.partialorder %v396, 0.0
    %v699 = vsel %vm698, 2.3561945, 0.7853982
    %vm700 = vcmp.eq.s32.totalorder %v660, inf
    %vm701 = vcmp.eq.s32.totalorder %v661, inf
    %vm702 = vmand %vm700, %vm701
    %v703 = vsel %vm702, %v699, %v697
    %v704 = vand.u32 2147483647, %v703
    %v705 = vand.u32 %v467, 2147483648
    %v706 = vor.u32 %v704, %v705
    %v707 = vsub.f32 %v565, %v659
    %v708 = vsub.f32 %v612, %v706
    %v709 = vld [vmem:[#allocation3] sm:$0xff]
    %v710 = vld [vmem:[#allocation3 + $0x8] sm:$0xff]
    %v711 = vmul.f32 %v707, %v707
    %v712 = vmul.f32 %v708, %v708
    %v713 = vadd.f32 %v709, %v711
    %v714 = vadd.f32 %v710, %v712
    %715 = vst [vmem:[#allocation3] sm:$0xff] %v713
    %716 = vst [vmem:[#allocation3 + $0x8] sm:$0xff] %v714
    // Predicated region
    $region22: #{fft_loss.1} parent=1 // pred_check
      %p717 = pneg %p32
    $region23: #{fft_loss.1} parent=1 // pred_check_branch
      %719 = sbr.rel (%p717) target = $region25
    $region24: #{fft_loss.1} parent=1 // pred_region
      %v720 = vld [vmem:[#allocation2] sm:$0xff]
      %v721 = vld [vmem:[#allocation2 + $0x8] sm:$0xff]
      %v722 = vadd.f32 %v720, %v721
      %723 = vadd.xlane.f32.xlu0 %v722
      %v724 = vpop.xlane.xlu0 %723
      %v725 = vrot.slane %v724, 4
      %v726 = vadd.f32 %v724, %v725
      %v727 = vrot.slane %v726, 2
      %v728 = vadd.f32 %v726, %v727
      %v729 = vrot.slane %v728, 1
      %v730 = vadd.f32 %v728, %v729
      %s731 = vtos %v730
      %s732 = scalar_lea.smem [#allocation7], 0
      %733 = sst [smem:[%s732]] %s731
      %v734 = vld [vmem:[#allocation3] sm:$0xff]
      %v735 = vld [vmem:[#allocation3 + $0x8] sm:$0xff]
      %v736 = vadd.f32 %v734, %v735
      %737 = vadd.xlane.f32.xlu0 %v736
      %v738 = vpop.xlane.xlu0 %737
      %v739 = vrot.slane %v738, 4
      %v740 = vadd.f32 %v738, %v739
      %v741 = vrot.slane %v740, 2
      %v742 = vadd.f32 %v740, %v741
      %v743 = vrot.slane %v742, 1
      %v744 = vadd.f32 %v742, %v743
      %s745 = vtos %v744
      %s746 = scalar_lea.smem [#allocation8], 0
      %747 = sst [smem:[%s746]] %s745
    $region25: #{fft_loss.1} parent=1 // pred_fallthru
      _
    // Predicated region
    $region26: #{fft_loss.1} parent=1 // pred_check
      _
    $region27: #{fft_loss.1} parent=1 // pred_check_branch
      %749 = sbr.rel (0) target = $region29
    $region28: #{fft_loss.1} parent=1 // pred_region
      %s751 = ssub.s32 16, 16
      %752 = vsyncadd [#allocation6], %s751
      %755 = dma.smem_to_hbm [#allocation7], 16, %s3, [#allocation6]
    $region29: #{fft_loss.1} parent=1 // pred_fallthru
      _
    // Predicated region
    $region30: #{fft_loss.1} parent=1 // pred_check
      _
    $region31: #{fft_loss.1} parent=1 // pred_check_branch
      %757 = sbr.rel (0) target = $region33
    $region32: #{fft_loss.1} parent=1 // pred_region
      %s759 = ssub.s32 16, 16
      %760 = vsyncadd [#allocation9], %s759
      %763 = dma.smem_to_hbm [#allocation8], 16, %s4, [#allocation9]
    $region33: #{fft_loss.1} parent=1 // pred_fallthru
      _
    // Predicated region
    $region34: #{fft_loss.1} parent=1 // pred_check
      _
    $region35: #{fft_loss.1} parent=1 // pred_check_branch
      %765 = sbr.rel (0) target = $region37
    $region36: #{fft_loss.1} parent=1 // pred_region
      %766 = dma.done [#allocation6], 16
    $region37: #{fft_loss.1} parent=1 // pred_fallthru
      _
    // Predicated region
    $region38: #{fft_loss.1} parent=1 // pred_check
      _
    $region39: #{fft_loss.1} parent=1 // pred_check_branch
      %768 = sbr.rel (0) target = $region41
    $region40: #{fft_loss.1} parent=1 // pred_region
      %769 = dma.done [#allocation9], 16
    $region41: #{fft_loss.1} parent=1 // pred_fallthru
      _
    %770 = sfence
    %771 = vsyncpa [#allocation5], 1
    %772 = vsyncpa [#allocation6], 1
    %773 = vsyncpa [#allocation9], 1

</llo_original>
